<compile_context>
chip_gen: v7x
topology: tpu7x:2x2x1
jax: 0.10.0
libtpu: 0.0.40
codegen_flags: <defaults>
</compile_context>

<pallas_src>
import functools

import jax
import jax.numpy as jnp
from jax.experimental import pallas as pl
from jax.experimental.pallas import tpu as pltpu

_DROPOUT_P = 0.25
_KEEP_SCALE = 1.0 / (1.0 - _DROPOUT_P)          # python float -> jaxpr literal
_DROP_THRESHOLD = int(_DROPOUT_P * (1 << 31))   # keep iff low-31-bits >= thr


def _round_up(x, m):
    return ((x + m - 1) // m) * m


def _hash_u32(x):
    """lowbias32 integer finalizer (Chris Wellons): cheap, good avalanche.

    Only uses uint32 mul / xor / logical-shift, which lower on Mosaic and on
    the CPU interpret fallback (unlike pltpu.prng_*)."""
    x = x ^ (x >> 16)
    x = x * jnp.uint32(0x7FEB352D)
    x = x ^ (x >> 15)
    x = x * jnp.uint32(0x846CA68B)
    x = x ^ (x >> 16)
    return x


def _make_fused_mlp_kernel(num_layers, n_out, tile_rows):
    """Fused: num_layers x (linear -> ReLU -> dropout(0.25)) then log_softmax."""

    def kernel(salt_ref, x_ref, *args):
        o_ref = args[2 * num_layers]
        row0 = pl.program_id(0) * tile_rows          # global row offset of tile

        h = x_ref[...]                               # (TB, IN_PAD) bf16
        for l in range(num_layers):
            w = args[2 * l][...]                     # (K_PAD, N_PAD) bf16, resident
            b = args[2 * l + 1][...]                 # (1, N_PAD)   f32, resident
            # MXU: bf16 x bf16 -> f32 accumulation.
            y = jnp.dot(h, w, preferred_element_type=jnp.float32)
            # Epilogue in f32 (v5e has no bf16 VPU): bias + ReLU.
            y = jnp.maximum(y + b, 0.0)

            # --- dropout(p=0.25): counter-based hash PRNG ------------------
            rows = jax.lax.broadcasted_iota(jnp.int32, y.shape, 0) + row0
            cols = jax.lax.broadcasted_iota(jnp.int32, y.shape, 1)
            ctr = (rows * y.shape[1] + cols) ^ salt_ref[l]
            bits = _hash_u32(ctr.astype(jnp.uint32))
            keep = (bits & jnp.uint32(0x7FFFFFFF)).astype(jnp.int32) >= _DROP_THRESHOLD
            y = jnp.where(keep, y * _KEEP_SCALE, 0.0)   # inverted dropout, P(keep)=0.75

            # bf16 between layers (feeds next MXU pass); keep f32 for softmax.
            h = y.astype(jnp.bfloat16) if l + 1 < num_layers else y

        # --- log_softmax over the real n_out lanes (padded lanes -> -inf) --
        cols = jax.lax.broadcasted_iota(jnp.int32, h.shape, 1)
        logits = jnp.where(cols < n_out, h, -jnp.inf)
        m = jnp.max(logits, axis=1, keepdims=True)
        shifted = logits - m
        lse = jnp.log(jnp.sum(jnp.exp(shifted), axis=1, keepdims=True))
        o_ref[...] = (shifted - lse).astype(o_ref.dtype)

    return kernel


def init_mlp_params(key, n_in, n_out, n_hids, w_dtype=jnp.bfloat16):
    """nn.Linear-style U(-1/sqrt(fan_in), 1/sqrt(fan_in)) init, stored
    transposed as (fan_in, fan_out) and zero-padded to 128-lane multiples."""
    dims = [n_in] + list(n_hids) + [n_out]
    params = []
    for i in range(len(dims) - 1):
        key, kw, kb = jax.random.split(key, 3)
        fan_in, fan_out = dims[i], dims[i + 1]
        bound = 1.0 / (fan_in ** 0.5)
        w = jax.random.uniform(kw, (fan_in, fan_out), jnp.float32, -bound, bound)
        b = jax.random.uniform(kb, (1, fan_out), jnp.float32, -bound, bound)
        in_pad, out_pad = _round_up(fan_in, 128), _round_up(fan_out, 128)
        w_p = jnp.zeros((in_pad, out_pad), w_dtype).at[:fan_in, :fan_out].set(
            w.astype(w_dtype))
        b_p = jnp.zeros((1, out_pad), jnp.float32).at[:, :fan_out].set(b)
        params.append((w_p, b_p))
    return params


def _make_layer_salts(seed, num_layers):
    """Per-layer int32 salts derived from the base seed (hashed in-kernel)."""
    s = seed.reshape(-1)[0].astype(jnp.uint32)
    salts = (s * jnp.uint32(0x9E3779B1)
             + jnp.arange(1, num_layers + 1, dtype=jnp.uint32) * jnp.uint32(0x01000193))
    return jax.lax.bitcast_convert_type(salts, jnp.int32)


@functools.partial(jax.jit, static_argnames=("n_in", "n_out"))
def mlp_forward(x, params, seed, *, n_in, n_out):
    batch = x.shape[0]
    num_layers = len(params)
    in_pad = params[0][0].shape[0]
    out_pad = params[-1][0].shape[1]

    # Batch tiling: big lane-dense tiles (per-step overhead ~0.35 us), but at
    # least 2 grid steps for mid/large batches so the "parallel" axis can be
    # split across v7x's two TensorCores.  tb is always a multiple of 8.
    if batch >= 16:
        tb = min(512, _round_up((batch + 1) // 2, 8))
    else:
        tb = _round_up(batch, 8)
    b_pad = _round_up(batch, tb)

    # bf16 input stream: halves the per-step HBM DMA and its VMEM buffers.
    x_p = jnp.zeros((b_pad, in_pad), jnp.bfloat16).at[:batch, :n_in].set(
        x.astype(jnp.bfloat16))

    salts = _make_layer_salts(seed, num_layers)

    in_specs = [pl.BlockSpec((tb, in_pad), lambda i, s: (i, 0))]
    flat_wb = []
    for w, b in params:
        flat_wb += [w, b]
        # Constant block index -> weights/biases stay VMEM-resident across the
        # whole batch grid (DMA'd once, reused every step).
        in_specs.append(pl.BlockSpec(w.shape, lambda i, s: (0, 0)))
        in_specs.append(pl.BlockSpec(b.shape, lambda i, s: (0, 0)))

    # VMEM budget: resident weights/biases (x2 for default double buffering),
    # double-buffered x/out tiles, plus activation slack.  Clamp to the
    # smallest per-core VMEM (v7x: 64 MiB physical per core).
    max_pad = max([in_pad] + [int(w.shape[1]) for w, _ in params])
    w_bytes = sum(w.size * w.dtype.itemsize + b.size * b.dtype.itemsize
                  for w, b in params)
    vmem_need = (2 * w_bytes
                 + 2 * tb * in_pad * 2
                 + 2 * tb * out_pad * 4
                 + 8 * tb * max_pad * 4
                 + (4 << 20))
    vmem_limit = int(min(max(vmem_need, 32 << 20), 56 << 20))
    # NOTE: if 2*w_bytes ever approaches ~half this budget (large hidden dims),
    # switch to a layer-/K-tiled grid instead of keeping all weights resident.

    flops = 2 * b_pad * sum(int(w.shape[0]) * int(w.shape[1]) for w, _ in params)
    bytes_accessed = int(x_p.size * 2 + w_bytes + b_pad * out_pad * 4)

    out = pl.pallas_call(
        _make_fused_mlp_kernel(num_layers, n_out, tb),
        out_shape=jax.ShapeDtypeStruct((b_pad, out_pad), jnp.float32),
        grid_spec=pltpu.PrefetchScalarGridSpec(
            num_scalar_prefetch=1,
            grid=(b_pad // tb,),
            in_specs=in_specs,
            out_specs=pl.BlockSpec((tb, out_pad), lambda i, s: (i, 0)),
        ),
        compiler_params=pltpu.CompilerParams(
            dimension_semantics=("parallel",),
            vmem_limit_bytes=vmem_limit),
        cost_estimate=pl.CostEstimate(
            flops=flops,
            transcendentals=b_pad * out_pad,
            bytes_accessed=bytes_accessed),
    )(salts, x_p, *flat_wb)

    return out[:batch, :n_out]


if __name__ == "__main__":
    key = jax.random.PRNGKey(0)
    kx, kp = jax.random.split(key)

    batch = 8
    n_in, n_out = 32, 16
    n_hids = [64, 32]

    x = jax.random.normal(kx, (batch, n_in), dtype=jnp.float32)
    params = init_mlp_params(kp, n_in, n_out, n_hids)
    seed = jnp.array([1234], dtype=jnp.int32)   # base dropout seed

    out = mlp_forward(x, params, seed, n_in=n_in, n_out=n_out)
    out = jax.block_until_ready(out)

    assert out.shape == (batch, n_out)
    # rows of log_softmax must exp-sum to 1
    assert jnp.allclose(jnp.sum(jnp.exp(out), axis=1), 1.0, atol=1e-3)
    print("KERNEL_OK")
</pallas_src>

<mosaic_0001>
module attributes {stable_mosaic.version = 11 : i64} {
  func.func @kernel(%arg0: i32, %arg1: memref<3xi32, #tpu.memory_space<smem>>, %arg2: memref<8x128xbf16, #tpu.memory_space<vmem>>, %arg3: memref<128x128xbf16, #tpu.memory_space<vmem>>, %arg4: memref<1x128xf32, #tpu.memory_space<vmem>>, %arg5: memref<128x128xbf16, #tpu.memory_space<vmem>>, %arg6: memref<1x128xf32, #tpu.memory_space<vmem>>, %arg7: memref<128x128xbf16, #tpu.memory_space<vmem>>, %arg8: memref<1x128xf32, #tpu.memory_space<vmem>>, %arg9: memref<8x128xf32, #tpu.memory_space<vmem>>) attributes {dimension_semantics = [#tpu.dimension_semantics<parallel>], iteration_bounds = array<i64: 1>, scalar_prefetch = 1 : i64, scratch_operands = 0 : i64, tpu.core_type = #tpu.core_type<tc>, window_params = [{transform_indices = @transform_0, window_bounds = array<i64: 8, 128>}, {pipeline_mode = #tpu.pipeline_mode<synchronous>, transform_indices = @transform_1, window_bounds = array<i64: 128, 128>}, {pipeline_mode = #tpu.pipeline_mode<synchronous>, transform_indices = @transform_2, window_bounds = array<i64: 1, 128>}, {pipeline_mode = #tpu.pipeline_mode<synchronous>, transform_indices = @transform_3, window_bounds = array<i64: 128, 128>}, {pipeline_mode = #tpu.pipeline_mode<synchronous>, transform_indices = @transform_4, window_bounds = array<i64: 1, 128>}, {pipeline_mode = #tpu.pipeline_mode<synchronous>, transform_indices = @transform_5, window_bounds = array<i64: 128, 128>}, {pipeline_mode = #tpu.pipeline_mode<synchronous>, transform_indices = @transform_6, window_bounds = array<i64: 1, 128>}, {transform_indices = @transform_7, window_bounds = array<i64: 8, 128>}]} {
    %c8_i32 = arith.constant 8 : i32
    %0 = arith.muli %arg0, %c8_i32 : i32
    %c0 = arith.constant 0 : index
    %c0_0 = arith.constant 0 : index
    %1 = vector.load %arg2[%c0, %c0_0] : memref<8x128xbf16, #tpu.memory_space<vmem>>, vector<8x128xbf16>
    %c0_1 = arith.constant 0 : index
    %c0_2 = arith.constant 0 : index
    %2 = vector.load %arg3[%c0_1, %c0_2] : memref<128x128xbf16, #tpu.memory_space<vmem>>, vector<128x128xbf16>
    %c0_3 = arith.constant 0 : index
    %c0_4 = arith.constant 0 : index
    %3 = vector.load %arg4[%c0_3, %c0_4] : memref<1x128xf32, #tpu.memory_space<vmem>>, vector<1x128xf32>
    %cst = arith.constant dense<0.000000e+00> : vector<8x128xf32>
    %4 = tpu.matmul %1, %2, %cst {dimension_numbers = #tpu.dot_dimension_numbers<[1], [0], [0], [1], [0, 0, 1, 1], [], []>} : vector<8x128xbf16>, vector<128x128xbf16>, vector<8x128xf32> -> vector<8x128xf32>
    %5 = vector.broadcast %3 : vector<1x128xf32> to vector<8x128xf32>
    %6 = arith.addf %4, %5 : vector<8x128xf32>
    %cst_5 = arith.constant 0.000000e+00 : f32
    %7 = vector.broadcast %cst_5 : f32 to vector<8x128xf32>
    %8 = arith.maximumf %6, %7 : vector<8x128xf32>
    %9 = tpu.iota {dimensions = array<i32: 0>} : vector<8x128xi32>
    %10 = vector.broadcast %0 : i32 to vector<8x128xi32>
    %11 = arith.addi %9, %10 : vector<8x128xi32>
    %12 = tpu.iota {dimensions = array<i32: 1>} : vector<8x128xi32>
    %c128_i32 = arith.constant 128 : i32
    %13 = vector.broadcast %c128_i32 : i32 to vector<8x128xi32>
    %14 = arith.muli %11, %13 : vector<8x128xi32>
    %15 = arith.addi %14, %12 : vector<8x128xi32>
    %c0_6 = arith.constant 0 : index
    %16 = memref.load %arg1[%c0_6] : memref<3xi32, #tpu.memory_space<smem>>
    %17 = vector.broadcast %16 : i32 to vector<8x128xi32>
    %18 = arith.xori %15, %17 : vector<8x128xi32>
    %c16_i32 = arith.constant 16 : i32
    %19 = vector.broadcast %c16_i32 : i32 to vector<8x128xi32>
    %20 = arith.shrui %18, %19 : vector<8x128xi32>
    %21 = arith.xori %18, %20 : vector<8x128xi32>
    %c2146121005_i32 = arith.constant 2146121005 : i32
    %22 = vector.broadcast %c2146121005_i32 : i32 to vector<8x128xi32>
    %23 = arith.muli %21, %22 : vector<8x128xi32>
    %c15_i32 = arith.constant 15 : i32
    %24 = vector.broadcast %c15_i32 : i32 to vector<8x128xi32>
    %25 = arith.shrui %23, %24 : vector<8x128xi32>
    %26 = arith.xori %23, %25 : vector<8x128xi32>
    %c-2073254261_i32 = arith.constant -2073254261 : i32
    %27 = vector.broadcast %c-2073254261_i32 : i32 to vector<8x128xi32>
    %28 = arith.muli %26, %27 : vector<8x128xi32>
    %c16_i32_7 = arith.constant 16 : i32
    %29 = vector.broadcast %c16_i32_7 : i32 to vector<8x128xi32>
    %30 = arith.shrui %28, %29 : vector<8x128xi32>
    %31 = arith.xori %28, %30 : vector<8x128xi32>
    %c2147483647_i32 = arith.constant 2147483647 : i32
    %32 = vector.broadcast %c2147483647_i32 : i32 to vector<8x128xi32>
    %33 = arith.andi %31, %32 : vector<8x128xi32>
    %c536870912_i32 = arith.constant 536870912 : i32
    %34 = vector.broadcast %c536870912_i32 : i32 to vector<8x128xi32>
    %35 = arith.cmpi sge, %33, %34 : vector<8x128xi32>
    %cst_8 = arith.constant 1.33333337 : f32
    %36 = vector.broadcast %cst_8 : f32 to vector<8x128xf32>
    %37 = arith.mulf %8, %36 : vector<8x128xf32>
    %cst_9 = arith.constant 0.000000e+00 : f32
    %38 = vector.broadcast %cst_9 : f32 to vector<8x128xf32>
    %39 = arith.select %35, %37, %38 : vector<8x128xi1>, vector<8x128xf32>
    %40 = arith.truncf %39 : vector<8x128xf32> to vector<8x128xbf16>
    %c0_10 = arith.constant 0 : index
    %c0_11 = arith.constant 0 : index
    %41 = vector.load %arg5[%c0_10, %c0_11] : memref<128x128xbf16, #tpu.memory_space<vmem>>, vector<128x128xbf16>
    %c0_12 = arith.constant 0 : index
    %c0_13 = arith.constant 0 : index
    %42 = vector.load %arg6[%c0_12, %c0_13] : memref<1x128xf32, #tpu.memory_space<vmem>>, vector<1x128xf32>
    %cst_14 = arith.constant dense<0.000000e+00> : vector<8x128xf32>
    %43 = tpu.matmul %40, %41, %cst_14 {dimension_numbers = #tpu.dot_dimension_numbers<[1], [0], [0], [1], [0, 0, 1, 1], [], []>} : vector<8x128xbf16>, vector<128x128xbf16>, vector<8x128xf32> -> vector<8x128xf32>
    %44 = vector.broadcast %42 : vector<1x128xf32> to vector<8x128xf32>
    %45 = arith.addf %43, %44 : vector<8x128xf32>
    %cst_15 = arith.constant 0.000000e+00 : f32
    %46 = vector.broadcast %cst_15 : f32 to vector<8x128xf32>
    %47 = arith.maximumf %45, %46 : vector<8x128xf32>
    %48 = tpu.iota {dimensions = array<i32: 0>} : vector<8x128xi32>
    %49 = vector.broadcast %0 : i32 to vector<8x128xi32>
    %50 = arith.addi %48, %49 : vector<8x128xi32>
    %51 = tpu.iota {dimensions = array<i32: 1>} : vector<8x128xi32>
    %c128_i32_16 = arith.constant 128 : i32
    %52 = vector.broadcast %c128_i32_16 : i32 to vector<8x128xi32>
    %53 = arith.muli %50, %52 : vector<8x128xi32>
    %54 = arith.addi %53, %51 : vector<8x128xi32>
    %c1 = arith.constant 1 : index
    %55 = memref.load %arg1[%c1] : memref<3xi32, #tpu.memory_space<smem>>
    %56 = vector.broadcast %55 : i32 to vector<8x128xi32>
    %57 = arith.xori %54, %56 : vector<8x128xi32>
    %c16_i32_17 = arith.constant 16 : i32
    %58 = vector.broadcast %c16_i32_17 : i32 to vector<8x128xi32>
    %59 = arith.shrui %57, %58 : vector<8x128xi32>
    %60 = arith.xori %57, %59 : vector<8x128xi32>
    %c2146121005_i32_18 = arith.constant 2146121005 : i32
    %61 = vector.broadcast %c2146121005_i32_18 : i32 to vector<8x128xi32>
    %62 = arith.muli %60, %61 : vector<8x128xi32>
    %c15_i32_19 = arith.constant 15 : i32
    %63 = vector.broadcast %c15_i32_19 : i32 to vector<8x128xi32>
    %64 = arith.shrui %62, %63 : vector<8x128xi32>
    %65 = arith.xori %62, %64 : vector<8x128xi32>
    %c-2073254261_i32_20 = arith.constant -2073254261 : i32
    %66 = vector.broadcast %c-2073254261_i32_20 : i32 to vector<8x128xi32>
    %67 = arith.muli %65, %66 : vector<8x128xi32>
    %c16_i32_21 = arith.constant 16 : i32
    %68 = vector.broadcast %c16_i32_21 : i32 to vector<8x128xi32>
    %69 = arith.shrui %67, %68 : vector<8x128xi32>
    %70 = arith.xori %67, %69 : vector<8x128xi32>
    %c2147483647_i32_22 = arith.constant 2147483647 : i32
    %71 = vector.broadcast %c2147483647_i32_22 : i32 to vector<8x128xi32>
    %72 = arith.andi %70, %71 : vector<8x128xi32>
    %c536870912_i32_23 = arith.constant 536870912 : i32
    %73 = vector.broadcast %c536870912_i32_23 : i32 to vector<8x128xi32>
    %74 = arith.cmpi sge, %72, %73 : vector<8x128xi32>
    %cst_24 = arith.constant 1.33333337 : f32
    %75 = vector.broadcast %cst_24 : f32 to vector<8x128xf32>
    %76 = arith.mulf %47, %75 : vector<8x128xf32>
    %cst_25 = arith.constant 0.000000e+00 : f32
    %77 = vector.broadcast %cst_25 : f32 to vector<8x128xf32>
    %78 = arith.select %74, %76, %77 : vector<8x128xi1>, vector<8x128xf32>
    %79 = arith.truncf %78 : vector<8x128xf32> to vector<8x128xbf16>
    %c0_26 = arith.constant 0 : index
    %c0_27 = arith.constant 0 : index
    %80 = vector.load %arg7[%c0_26, %c0_27] : memref<128x128xbf16, #tpu.memory_space<vmem>>, vector<128x128xbf16>
    %c0_28 = arith.constant 0 : index
    %c0_29 = arith.constant 0 : index
    %81 = vector.load %arg8[%c0_28, %c0_29] : memref<1x128xf32, #tpu.memory_space<vmem>>, vector<1x128xf32>
    %cst_30 = arith.constant dense<0.000000e+00> : vector<8x128xf32>
    %82 = tpu.matmul %79, %80, %cst_30 {dimension_numbers = #tpu.dot_dimension_numbers<[1], [0], [0], [1], [0, 0, 1, 1], [], []>} : vector<8x128xbf16>, vector<128x128xbf16>, vector<8x128xf32> -> vector<8x128xf32>
    %83 = vector.broadcast %81 : vector<1x128xf32> to vector<8x128xf32>
    %84 = arith.addf %82, %83 : vector<8x128xf32>
    %cst_31 = arith.constant 0.000000e+00 : f32
    %85 = vector.broadcast %cst_31 : f32 to vector<8x128xf32>
    %86 = arith.maximumf %84, %85 : vector<8x128xf32>
    %87 = tpu.iota {dimensions = array<i32: 0>} : vector<8x128xi32>
    %88 = vector.broadcast %0 : i32 to vector<8x128xi32>
    %89 = arith.addi %87, %88 : vector<8x128xi32>
    %90 = tpu.iota {dimensions = array<i32: 1>} : vector<8x128xi32>
    %c128_i32_32 = arith.constant 128 : i32
    %91 = vector.broadcast %c128_i32_32 : i32 to vector<8x128xi32>
    %92 = arith.muli %89, %91 : vector<8x128xi32>
    %93 = arith.addi %92, %90 : vector<8x128xi32>
    %c2 = arith.constant 2 : index
    %94 = memref.load %arg1[%c2] : memref<3xi32, #tpu.memory_space<smem>>
    %95 = vector.broadcast %94 : i32 to vector<8x128xi32>
    %96 = arith.xori %93, %95 : vector<8x128xi32>
    %c16_i32_33 = arith.constant 16 : i32
    %97 = vector.broadcast %c16_i32_33 : i32 to vector<8x128xi32>
    %98 = arith.shrui %96, %97 : vector<8x128xi32>
    %99 = arith.xori %96, %98 : vector<8x128xi32>
    %c2146121005_i32_34 = arith.constant 2146121005 : i32
    %100 = vector.broadcast %c2146121005_i32_34 : i32 to vector<8x128xi32>
    %101 = arith.muli %99, %100 : vector<8x128xi32>
    %c15_i32_35 = arith.constant 15 : i32
    %102 = vector.broadcast %c15_i32_35 : i32 to vector<8x128xi32>
    %103 = arith.shrui %101, %102 : vector<8x128xi32>
    %104 = arith.xori %101, %103 : vector<8x128xi32>
    %c-2073254261_i32_36 = arith.constant -2073254261 : i32
    %105 = vector.broadcast %c-2073254261_i32_36 : i32 to vector<8x128xi32>
    %106 = arith.muli %104, %105 : vector<8x128xi32>
    %c16_i32_37 = arith.constant 16 : i32
    %107 = vector.broadcast %c16_i32_37 : i32 to vector<8x128xi32>
    %108 = arith.shrui %106, %107 : vector<8x128xi32>
    %109 = arith.xori %106, %108 : vector<8x128xi32>
    %c2147483647_i32_38 = arith.constant 2147483647 : i32
    %110 = vector.broadcast %c2147483647_i32_38 : i32 to vector<8x128xi32>
    %111 = arith.andi %109, %110 : vector<8x128xi32>
    %c536870912_i32_39 = arith.constant 536870912 : i32
    %112 = vector.broadcast %c536870912_i32_39 : i32 to vector<8x128xi32>
    %113 = arith.cmpi sge, %111, %112 : vector<8x128xi32>
    %cst_40 = arith.constant 1.33333337 : f32
    %114 = vector.broadcast %cst_40 : f32 to vector<8x128xf32>
    %115 = arith.mulf %86, %114 : vector<8x128xf32>
    %cst_41 = arith.constant 0.000000e+00 : f32
    %116 = vector.broadcast %cst_41 : f32 to vector<8x128xf32>
    %117 = arith.select %113, %115, %116 : vector<8x128xi1>, vector<8x128xf32>
    %118 = tpu.iota {dimensions = array<i32: 1>} : vector<8x128xi32>
    %c16_i32_42 = arith.constant 16 : i32
    %119 = vector.broadcast %c16_i32_42 : i32 to vector<8x128xi32>
    %120 = arith.cmpi slt, %118, %119 : vector<8x128xi32>
    %cst_43 = arith.constant 0xFF800000 : f32
    %121 = vector.broadcast %cst_43 : f32 to vector<8x128xf32>
    %122 = arith.select %120, %117, %121 : vector<8x128xi1>, vector<8x128xf32>
    %cst_44 = arith.constant dense<0xFF800000> : vector<8xf32>
    %123 = vector.multi_reduction <maximumf>, %122, %cst_44 [1] : vector<8x128xf32> to vector<8xf32>
    %124 = vector.shape_cast %123 : vector<8xf32> to vector<8x1xf32>
    %125 = vector.broadcast %124 : vector<8x1xf32> to vector<8x128xf32>
    %126 = arith.subf %122, %125 : vector<8x128xf32>
    %127 = math.exp %126 : vector<8x128xf32>
    %cst_45 = arith.constant dense<0.000000e+00> : vector<8xf32>
    %128 = vector.multi_reduction <add>, %127, %cst_45 [1] : vector<8x128xf32> to vector<8xf32>
    %129 = vector.shape_cast %128 : vector<8xf32> to vector<8x1xf32>
    %130 = math.log %129 : vector<8x1xf32>
    %131 = vector.broadcast %130 : vector<8x1xf32> to vector<8x128xf32>
    %132 = arith.subf %126, %131 : vector<8x128xf32>
    %c0_46 = arith.constant 0 : index
    %c0_47 = arith.constant 0 : index
    %133 = vector.load %arg9[%c0_46, %c0_47] : memref<8x128xf32, #tpu.memory_space<vmem>>, vector<8x128xf32>
    tpu.vector_store %arg9[%c0_46, %c0_47], %132 {strides = array<i32>} : memref<8x128xf32, #tpu.memory_space<vmem>>, vector<8x128xf32>,
    return
  }
  func.func @transform_0(%arg0: i32, %arg1: memref<3xi32, #tpu.memory_space<smem>>) -> (i32, i32) {
    %c0_i32 = arith.constant 0 : i32
    %c0_i32_0 = arith.constant 0 : i32
    return %arg0, %c0_i32 : i32, i32
  }
  func.func @transform_1(%arg0: i32, %arg1: memref<3xi32, #tpu.memory_space<smem>>) -> (i32, i32) {
    %c0_i32 = arith.constant 0 : i32
    %c0_i32_0 = arith.constant 0 : i32
    %c0_i32_1 = arith.constant 0 : i32
    return %c0_i32, %c0_i32_0 : i32, i32
  }
  func.func @transform_2(%arg0: i32, %arg1: memref<3xi32, #tpu.memory_space<smem>>) -> (i32, i32) {
    %c0_i32 = arith.constant 0 : i32
    %c0_i32_0 = arith.constant 0 : i32
    %c0_i32_1 = arith.constant 0 : i32
    return %c0_i32, %c0_i32_0 : i32, i32
  }
  func.func @transform_3(%arg0: i32, %arg1: memref<3xi32, #tpu.memory_space<smem>>) -> (i32, i32) {
    %c0_i32 = arith.constant 0 : i32
    %c0_i32_0 = arith.constant 0 : i32
    %c0_i32_1 = arith.constant 0 : i32
    return %c0_i32, %c0_i32_0 : i32, i32
  }
  func.func @transform_4(%arg0: i32, %arg1: memref<3xi32, #tpu.memory_space<smem>>) -> (i32, i32) {
    %c0_i32 = arith.constant 0 : i32
    %c0_i32_0 = arith.constant 0 : i32
    %c0_i32_1 = arith.constant 0 : i32
    return %c0_i32, %c0_i32_0 : i32, i32
  }
  func.func @transform_5(%arg0: i32, %arg1: memref<3xi32, #tpu.memory_space<smem>>) -> (i32, i32) {
    %c0_i32 = arith.constant 0 : i32
    %c0_i32_0 = arith.constant 0 : i32
    %c0_i32_1 = arith.constant 0 : i32
    return %c0_i32, %c0_i32_0 : i32, i32
  }
  func.func @transform_6(%arg0: i32, %arg1: memref<3xi32, #tpu.memory_space<smem>>) -> (i32, i32) {
    %c0_i32 = arith.constant 0 : i32
    %c0_i32_0 = arith.constant 0 : i32
    %c0_i32_1 = arith.constant 0 : i32
    return %c0_i32, %c0_i32_0 : i32, i32
  }
  func.func @transform_7(%arg0: i32, %arg1: memref<3xi32, #tpu.memory_space<smem>>) -> (i32, i32) {
    %c0_i32 = arith.constant 0 : i32
    %c0_i32_0 = arith.constant 0 : i32
    return %arg0, %c0_i32 : i32, i32
  }
}

</mosaic_0001>

<llo_original>
// kernel: mlp_forward.1
$region0: #{mlp_forward.1}
  #allocation0 [shape = 'u32[]', space=smem, size = 0x4, offset = 0x4, fixed_abs, tag = 'smem constant byte address 0x4 - core index']
  #allocation1 [shape = 'u32[144,128]{1,0:T(1,128)}', space=vmem, size = 0x12000, scoped, tag = 'internal scratch']
  #allocation2 [shape = 's32[1]{0}', space=sflag, size = 0x4, scoped, tag = 'scoped memory for mlp_forward.1']
  #allocation3 [shape = 'u8[512]{0}', space=smem, size = 0x200, scoped, tag = 'prefetched SMEM operand 0']
  %s0 = inlined_call_operand.vmem [shape: s32[3], index: 0, kind: input, shape index: {}]
  %s1 = inlined_call_operand.vmem [shape: bf16[8,128], index: 1, kind: input, shape index: {}]
  %s2 = inlined_call_operand.hbm [shape: bf16[128,128], index: 2, kind: input, shape index: {}]
  %s3 = inlined_call_operand.vmem [shape: f32[1,128], index: 3, kind: input, shape index: {}]
  %s4 = inlined_call_operand.hbm [shape: bf16[128,128], index: 4, kind: input, shape index: {}]
  %s5 = inlined_call_operand.vmem [shape: f32[1,128], index: 5, kind: input, shape index: {}]
  %s6 = inlined_call_operand.hbm [shape: bf16[128,128], index: 6, kind: input, shape index: {}]
  %s7 = inlined_call_operand.vmem [shape: f32[1,128], index: 7, kind: input, shape index: {}]
  %s8 = inlined_call_operand.hbm [shape: f32[8,128], index: 8, kind: output, shape index: {}]
  %s9 = sld [smem:[#allocation0]]
  $region50: #{mlp_forward.1} parent=0
    _
  %s11 = ssub.s32 1, %s9
  %s12 = scalar_select 0, %s11, %s9
  %s13 = sshll.u32 %s0, 4
  %s14 = int_to_ptr.vmem [resolvable:$true] %s13
  %16 = dma.vmem_to_smem %s14, 16, [#allocation3], [#allocation2]
  %17 = dma.done [#allocation2], 16
  %18 = sfence
  $region1: #{mlp_forward.1} parent=0
    #allocation4 [shape = 'u8[32768]{0}', space=vmem, size = 0x8000, scoped, tag = 'input window, operand 2, single buffered']
    #allocation5 [shape = 's32[1]{0}', space=sflag, size = 0x4, scoped, tag = 'scoped memory for mlp_forward.1']
    #allocation6 [shape = 's32[1]{0}', space=sflag, size = 0x4, scoped, tag = 'scoped memory for mlp_forward.1']
    #allocation7 [shape = 'u8[32768]{0}', space=vmem, size = 0x8000, scoped, tag = 'input window, operand 4, single buffered']
    #allocation8 [shape = 's32[1]{0}', space=sflag, size = 0x4, scoped, tag = 'scoped memory for mlp_forward.1']
    #allocation9 [shape = 'u8[32768]{0}', space=vmem, size = 0x8000, scoped, tag = 'input window, operand 6, single buffered']
    #allocation10 [shape = 'u8[4096]{0}', space=vmem, size = 0x1000, scoped, tag = 'output window, operand 0, single buffered']
    %19 = vsyncpa [#allocation5], 0
    %20 = vsyncpa [#allocation8], 0
    %21 = vsyncpa [#allocation6], 0
    // Predicated region
    $region2: #{mlp_forward.1} parent=1 // pred_check
      _
    $region3: #{mlp_forward.1} parent=1 // pred_check_branch
      %23 = sbr.rel (0) target = $region5
    $region4: #{mlp_forward.1} parent=1 // pred_region
      _
    $region5: #{mlp_forward.1} parent=1 // pred_fallthru
      _
    // Predicated region
    $region6: #{mlp_forward.1} parent=1 // pred_check
      _
    $region7: #{mlp_forward.1} parent=1 // pred_check_branch
      %25 = sbr.rel (0) target = $region9
    $region8: #{mlp_forward.1} parent=1 // pred_region
      %s27 = ssub.s32 1024, 1024
      %28 = vsyncadd [#allocation5], %s27
      %s29 = sshll.u32 [#allocation4], 4
      %s30 = int_to_ptr.vmem [resolvable:$true] %s29
      %35 = dma.hbm_to_vmem [thread:$0]  %s2, 1024, %s30, [#allocation5], 64, 64, 4
    $region9: #{mlp_forward.1} parent=1 // pred_fallthru
      _
    // Predicated region
    $region10: #{mlp_forward.1} parent=1 // pred_check
      _
    $region11: #{mlp_forward.1} parent=1 // pred_check_branch
      %37 = sbr.rel (0) target = $region13
    $region12: #{mlp_forward.1} parent=1 // pred_region
      _
    $region13: #{mlp_forward.1} parent=1 // pred_fallthru
      _
    // Predicated region
    $region14: #{mlp_forward.1} parent=1 // pred_check
      _
    $region15: #{mlp_forward.1} parent=1 // pred_check_branch
      %39 = sbr.rel (0) target = $region17
    $region16: #{mlp_forward.1} parent=1 // pred_region
      %s41 = ssub.s32 1024, 1024
      %42 = vsyncadd [#allocation8], %s41
      %s43 = sshll.u32 [#allocation7], 4
      %s44 = int_to_ptr.vmem [resolvable:$true] %s43
      %49 = dma.hbm_to_vmem [thread:$0]  %s4, 1024, %s44, [#allocation8], 64, 64, 4
    $region17: #{mlp_forward.1} parent=1 // pred_fallthru
      _
    // Predicated region
    $region18: #{mlp_forward.1} parent=1 // pred_check
      _
    $region19: #{mlp_forward.1} parent=1 // pred_check_branch
      %51 = sbr.rel (0) target = $region21
    $region20: #{mlp_forward.1} parent=1 // pred_region
      _
    $region21: #{mlp_forward.1} parent=1 // pred_fallthru
      _
    // Predicated region
    $region22: #{mlp_forward.1} parent=1 // pred_check
      _
    $region23: #{mlp_forward.1} parent=1 // pred_check_branch
      %53 = sbr.rel (0) target = $region25
    $region24: #{mlp_forward.1} parent=1 // pred_region
      %s55 = ssub.s32 1024, 1024
      %56 = vsyncadd [#allocation8], %s55
      %s57 = sshll.u32 [#allocation9], 4
      %s58 = int_to_ptr.vmem [resolvable:$true] %s57
      %63 = dma.hbm_to_vmem [thread:$0]  %s6, 1024, %s58, [#allocation8], 64, 64, 4
    $region25: #{mlp_forward.1} parent=1 // pred_fallthru
      _
    // Predicated region
    $region26: #{mlp_forward.1} parent=1 // pred_check
      _
    $region27: #{mlp_forward.1} parent=1 // pred_check_branch
      %65 = sbr.rel (0) target = $region29
    $region28: #{mlp_forward.1} parent=1 // pred_region
      _
    $region29: #{mlp_forward.1} parent=1 // pred_fallthru
      _
    // Predicated region
    $region30: #{mlp_forward.1} parent=1 // pred_check
      _
    $region31: #{mlp_forward.1} parent=1 // pred_check_branch
      %67 = sbr.rel (0) target = $region33
    $region32: #{mlp_forward.1} parent=1 // pred_region
      %68 = dma.done [#allocation5], 1024
    $region33: #{mlp_forward.1} parent=1 // pred_fallthru
      _
    // Predicated region
    $region34: #{mlp_forward.1} parent=1 // pred_check
      _
    $region35: #{mlp_forward.1} parent=1 // pred_check_branch
      %70 = sbr.rel (0) target = $region37
    $region36: #{mlp_forward.1} parent=1 // pred_region
      %71 = dma.done [#allocation8], 1024
    $region37: #{mlp_forward.1} parent=1 // pred_fallthru
      _
    // Predicated region
    $region38: #{mlp_forward.1} parent=1 // pred_check
      _
    $region39: #{mlp_forward.1} parent=1 // pred_check_branch
      %73 = sbr.rel (0) target = $region41
    $region40: #{mlp_forward.1} parent=1 // pred_region
      %74 = dma.done [#allocation8], 1024
    $region41: #{mlp_forward.1} parent=1 // pred_fallthru
      _
    %s76 = smul.u32 0, 8
    %v77 = vld [vmem:[%s1] sm:$0xf]
    %v78 = vld [vmem:[#allocation4] sm:$0xf]
    %v79 = vld [vmem:[#allocation4 + $0x4] sm:$0xf]
    %v80 = vld [vmem:[#allocation4 + $0x8] sm:$0xf]
    %v81 = vld [vmem:[#allocation4 + $0xc] sm:$0xf]
    %v82 = vld [vmem:[#allocation4 + $0x10] sm:$0xf]
    %v83 = vld [vmem:[#allocation4 + $0x14] sm:$0xf]
    %v84 = vld [vmem:[#allocation4 + $0x18] sm:$0xf]
    %v85 = vld [vmem:[#allocation4 + $0x1c] sm:$0xf]
    %v86 = vld [vmem:[#allocation4 + $0x20] sm:$0xf]
    %v87 = vld [vmem:[#allocation4 + $0x24] sm:$0xf]
    %v88 = vld [vmem:[#allocation4 + $0x28] sm:$0xf]
    %v89 = vld [vmem:[#allocation4 + $0x2c] sm:$0xf]
    %v90 = vld [vmem:[#allocation4 + $0x30] sm:$0xf]
    %v91 = vld [vmem:[#allocation4 + $0x34] sm:$0xf]
    %v92 = vld [vmem:[#allocation4 + $0x38] sm:$0xf]
    %v93 = vld [vmem:[#allocation4 + $0x3c] sm:$0xf]
    %v94 = vld [vmem:[%s3] sm:$0x1]
    %v96 = vlaneseq
    %v97 = vshrl.u32 %v96, 7
    %v98 = vsub.s32 0, %v97
    %v99 = vrot.slane %v94, %v98
    %v117 = vunpack.c.l.b16 %v78
    %v118 = vunpack.c.l.b16 %v79
    %v119 = vunpack.c.l.b16 %v80
    %v120 = vunpack.c.l.b16 %v81
    %v121 = vunpack.c.l.b16 %v82
    %v122 = vunpack.c.l.b16 %v83
    %v123 = vunpack.c.l.b16 %v84
    %v124 = vunpack.c.l.b16 %v85
    %v125 = vunpack.c.l.b16 %v86
    %v126 = vunpack.c.l.b16 %v87
    %v127 = vunpack.c.l.b16 %v88
    %v128 = vunpack.c.l.b16 %v89
    %v129 = vunpack.c.l.b16 %v90
    %v130 = vunpack.c.l.b16 %v91
    %v131 = vunpack.c.l.b16 %v92
    %v132 = vunpack.c.l.b16 %v93
    %v133 = vpack.c.b16 %v118, %v117
    %v134 = vpack.c.b16 %v120, %v119
    %v135 = vpack.c.b16 %v122, %v121
    %v136 = vpack.c.b16 %v124, %v123
    %v137 = vpack.c.b16 %v126, %v125
    %v138 = vpack.c.b16 %v128, %v127
    %v139 = vpack.c.b16 %v130, %v129
    %v140 = vpack.c.b16 %v132, %v131
    %149 = vmatprep.subr.bf16.mxu0 0
    %150 = vmatpush1.bf16.msra.mxu0 %v133
    %151 = vmatprep.subr.bf16.mxu0 0
    %152 = vmatpush1.bf16.msra.mxu0 %v134
    %153 = vmatprep.subr.bf16.mxu0 0
    %154 = vmatpush1.bf16.msra.mxu0 %v135
    %155 = vmatprep.subr.bf16.mxu0 0
    %156 = vmatpush1.bf16.msra.mxu0 %v136
    %157 = vmatprep.subr.bf16.mxu0 0
    %158 = vmatpush1.bf16.msra.mxu0 %v137
    %159 = vmatprep.subr.bf16.mxu0 0
    %160 = vmatpush1.bf16.msra.mxu0 %v138
    %161 = vmatprep.subr.bf16.mxu0 0
    %162 = vmatpush1.bf16.msra.mxu0 %v139
    %163 = vmatprep.subr.bf16.mxu0 0
    %164 = vmatpush1.bf16.msra.mxu0 %v140
    %165 = vmatprep.subr.bf16.mxu0 0
    %166 = vmatpush1.bf16.msra.mxu0 0
    %167 = vmatprep.subr.bf16.mxu0 0
    %168 = vmatpush1.bf16.msra.mxu0 0
    %169 = vmatprep.subr.bf16.mxu0 0
    %170 = vmatpush1.bf16.msra.mxu0 0
    %171 = vmatprep.subr.bf16.mxu0 0
    %172 = vmatpush1.bf16.msra.mxu0 0
    %173 = vmatprep.subr.bf16.mxu0 0
    %174 = vmatpush1.bf16.msra.mxu0 0
    %175 = vmatprep.subr.bf16.mxu0 0
    %176 = vmatpush1.bf16.msra.mxu0 0
    %177 = vmatprep.subr.bf16.mxu0 0
    %178 = vmatpush1.bf16.msra.mxu0 0
    %179 = vmatprep.subr.bf16.mxu0 0
    %180 = vmatpush1.bf16.msra.mxu0 0
    %181 = vmatprep.mubr.bf16.mxu0 0
    %182 = vmatmul.mubr.bf16.gmra.mrb[0].mxu0 %v77
    %v183 = vpop.f32.mrb[0].mxu0
    %v184 = vadd.f32 %v99, %v183
    %v185 = vpop.f32.mrb[0].mxu0
    %v186 = vpop.f32.mrb[0].mxu0
    %v187 = vpop.f32.mrb[0].mxu0
    %188 = vdwg.mxu0
    %v189 = vmax.f32 %v184, 0.0
    %v190 = vlaneseq
    %v191 = vshrl.u32 %v190, 7
    %v192 = vstv %s76
    %v193 = vadd.s32 %v191, %v192
    %v194 = vlaneseq
    %v195 = vand.u32 %v194, 127
    %v196 = vmul.u32 %v193, 128
    %v197 = vadd.s32 %v196, %v195
    %s198 = sld [smem:[#allocation3]]
    %v199 = vstv %s198
    %v200 = vxor.u32 %v197, %v199
    %v201 = vshrl.u32 %v200, 16
    %v202 = vxor.u32 %v200, %v201
    %v203 = vmul.u32 %v202, 2146121005
    %v204 = vshrl.u32 %v203, 15
    %v205 = vxor.u32 %v203, %v204
    %v206 = vmul.u32 %v205, 2221713035
    %v207 = vshrl.u32 %v206, 16
    %v208 = vxor.u32 %v206, %v207
    %v209 = vand.u32 %v208, 2147483647
    %vm210 = vcmp.ge.s32.totalorder %v209, 536870912
    %v211 = vmul.f32 %v189, 1.3333334
    %v212 = vsel %vm210, %v211, 0.0
    %v213 = vpack.c.bf16 %v212, %v212
    %v214 = vld [vmem:[#allocation7] sm:$0xf]
    %v215 = vld [vmem:[#allocation7 + $0x4] sm:$0xf]
    %v216 = vld [vmem:[#allocation7 + $0x8] sm:$0xf]
    %v217 = vld [vmem:[#allocation7 + $0xc] sm:$0xf]
    %v218 = vld [vmem:[#allocation7 + $0x10] sm:$0xf]
    %v219 = vld [vmem:[#allocation7 + $0x14] sm:$0xf]
    %v220 = vld [vmem:[#allocation7 + $0x18] sm:$0xf]
    %v221 = vld [vmem:[#allocation7 + $0x1c] sm:$0xf]
    %v222 = vld [vmem:[#allocation7 + $0x20] sm:$0xf]
    %v223 = vld [vmem:[#allocation7 + $0x24] sm:$0xf]
    %v224 = vld [vmem:[#allocation7 + $0x28] sm:$0xf]
    %v225 = vld [vmem:[#allocation7 + $0x2c] sm:$0xf]
    %v226 = vld [vmem:[#allocation7 + $0x30] sm:$0xf]
    %v227 = vld [vmem:[#allocation7 + $0x34] sm:$0xf]
    %v228 = vld [vmem:[#allocation7 + $0x38] sm:$0xf]
    %v229 = vld [vmem:[#allocation7 + $0x3c] sm:$0xf]
    %v230 = vld [vmem:[%s5] sm:$0x1]
    %v232 = vlaneseq
    %v233 = vshrl.u32 %v232, 7
    %v234 = vsub.s32 0, %v233
    %v235 = vrot.slane %v230, %v234
    %v253 = vunpack.c.l.b16 %v214
    %v254 = vunpack.c.l.b16 %v215
    %v255 = vunpack.c.l.b16 %v216
    %v256 = vunpack.c.l.b16 %v217
    %v257 = vunpack.c.l.b16 %v218
    %v258 = vunpack.c.l.b16 %v219
    %v259 = vunpack.c.l.b16 %v220
    %v260 = vunpack.c.l.b16 %v221
    %v261 = vunpack.c.l.b16 %v222
    %v262 = vunpack.c.l.b16 %v223
    %v263 = vunpack.c.l.b16 %v224
    %v264 = vunpack.c.l.b16 %v225
    %v265 = vunpack.c.l.b16 %v226
    %v266 = vunpack.c.l.b16 %v227
    %v267 = vunpack.c.l.b16 %v228
    %v268 = vunpack.c.l.b16 %v229
    %v269 = vpack.c.b16 %v254, %v253
    %v270 = vpack.c.b16 %v256, %v255
    %v271 = vpack.c.b16 %v258, %v257
    %v272 = vpack.c.b16 %v260, %v259
    %v273 = vpack.c.b16 %v262, %v261
    %v274 = vpack.c.b16 %v264, %v263
    %v275 = vpack.c.b16 %v266, %v265
    %v276 = vpack.c.b16 %v268, %v267
    %285 = vmatprep.subr.bf16.mxu0 0
    %286 = vmatpush1.bf16.msra.mxu0 %v269
    %287 = vmatprep.subr.bf16.mxu0 0
    %288 = vmatpush1.bf16.msra.mxu0 %v270
    %289 = vmatprep.subr.bf16.mxu0 0
    %290 = vmatpush1.bf16.msra.mxu0 %v271
    %291 = vmatprep.subr.bf16.mxu0 0
    %292 = vmatpush1.bf16.msra.mxu0 %v272
    %293 = vmatprep.subr.bf16.mxu0 0
    %294 = vmatpush1.bf16.msra.mxu0 %v273
    %295 = vmatprep.subr.bf16.mxu0 0
    %296 = vmatpush1.bf16.msra.mxu0 %v274
    %297 = vmatprep.subr.bf16.mxu0 0
    %298 = vmatpush1.bf16.msra.mxu0 %v275
    %299 = vmatprep.subr.bf16.mxu0 0
    %300 = vmatpush1.bf16.msra.mxu0 %v276
    %301 = vmatprep.subr.bf16.mxu0 0
    %302 = vmatpush1.bf16.msra.mxu0 0
    %303 = vmatprep.subr.bf16.mxu0 0
    %304 = vmatpush1.bf16.msra.mxu0 0
    %305 = vmatprep.subr.bf16.mxu0 0
    %306 = vmatpush1.bf16.msra.mxu0 0
    %307 = vmatprep.subr.bf16.mxu0 0
    %308 = vmatpush1.bf16.msra.mxu0 0
    %309 = vmatprep.subr.bf16.mxu0 0
    %310 = vmatpush1.bf16.msra.mxu0 0
    %311 = vmatprep.subr.bf16.mxu0 0
    %312 = vmatpush1.bf16.msra.mxu0 0
    %313 = vmatprep.subr.bf16.mxu0 0
    %314 = vmatpush1.bf16.msra.mxu0 0
    %315 = vmatprep.subr.bf16.mxu0 0
    %316 = vmatpush1.bf16.msra.mxu0 0
    %317 = vmatprep.mubr.bf16.mxu0 0
    %318 = vmatmul.mubr.bf16.gmra.mrb[0].mxu0 %v213
    %v319 = vpop.f32.mrb[0].mxu0
    %v320 = vadd.f32 %v235, %v319
    %v321 = vpop.f32.mrb[0].mxu0
    %v322 = vpop.f32.mrb[0].mxu0
    %v323 = vpop.f32.mrb[0].mxu0
    %324 = vdwg.mxu0
    %v325 = vmax.f32 %v320, 0.0
    %s326 = sld [smem:[#allocation3 + $0x1]]
    %v327 = vstv %s326
    %v328 = vxor.u32 %v197, %v327
    %v329 = vshrl.u32 %v328, 16
    %v330 = vxor.u32 %v328, %v329
    %v331 = vmul.u32 %v330, 2146121005
    %v332 = vshrl.u32 %v331, 15
    %v333 = vxor.u32 %v331, %v332
    %v334 = vmul.u32 %v333, 2221713035
    %v335 = vshrl.u32 %v334, 16
    %v336 = vxor.u32 %v334, %v335
    %v337 = vand.u32 %v336, 2147483647
    %vm338 = vcmp.ge.s32.totalorder %v337, 536870912
    %v339 = vmul.f32 %v325, 1.3333334
    %v340 = vsel %vm338, %v339, 0.0
    %v341 = vpack.c.bf16 %v340, %v340
    %v342 = vld [vmem:[#allocation9] sm:$0xf]
    %v343 = vld [vmem:[#allocation9 + $0x4] sm:$0xf]
    %v344 = vld [vmem:[#allocation9 + $0x8] sm:$0xf]
    %v345 = vld [vmem:[#allocation9 + $0xc] sm:$0xf]
    %v346 = vld [vmem:[#allocation9 + $0x10] sm:$0xf]
    %v347 = vld [vmem:[#allocation9 + $0x14] sm:$0xf]
    %v348 = vld [vmem:[#allocation9 + $0x18] sm:$0xf]
    %v349 = vld [vmem:[#allocation9 + $0x1c] sm:$0xf]
    %v350 = vld [vmem:[#allocation9 + $0x20] sm:$0xf]
    %v351 = vld [vmem:[#allocation9 + $0x24] sm:$0xf]
    %v352 = vld [vmem:[#allocation9 + $0x28] sm:$0xf]
    %v353 = vld [vmem:[#allocation9 + $0x2c] sm:$0xf]
    %v354 = vld [vmem:[#allocation9 + $0x30] sm:$0xf]
    %v355 = vld [vmem:[#allocation9 + $0x34] sm:$0xf]
    %v356 = vld [vmem:[#allocation9 + $0x38] sm:$0xf]
    %v357 = vld [vmem:[#allocation9 + $0x3c] sm:$0xf]
    %v358 = vld [vmem:[%s7] sm:$0x1]
    %v360 = vlaneseq
    %v361 = vshrl.u32 %v360, 7
    %v362 = vsub.s32 0, %v361
    %v363 = vrot.slane %v358, %v362
    %v381 = vunpack.c.l.b16 %v342
    %v382 = vunpack.c.l.b16 %v343
    %v383 = vunpack.c.l.b16 %v344
    %v384 = vunpack.c.l.b16 %v345
    %v385 = vunpack.c.l.b16 %v346
    %v386 = vunpack.c.l.b16 %v347
    %v387 = vunpack.c.l.b16 %v348
    %v388 = vunpack.c.l.b16 %v349
    %v389 = vunpack.c.l.b16 %v350
    %v390 = vunpack.c.l.b16 %v351
    %v391 = vunpack.c.l.b16 %v352
    %v392 = vunpack.c.l.b16 %v353
    %v393 = vunpack.c.l.b16 %v354
    %v394 = vunpack.c.l.b16 %v355
    %v395 = vunpack.c.l.b16 %v356
    %v396 = vunpack.c.l.b16 %v357
    %v397 = vpack.c.b16 %v382, %v381
    %v398 = vpack.c.b16 %v384, %v383
    %v399 = vpack.c.b16 %v386, %v385
    %v400 = vpack.c.b16 %v388, %v387
    %v401 = vpack.c.b16 %v390, %v389
    %v402 = vpack.c.b16 %v392, %v391
    %v403 = vpack.c.b16 %v394, %v393
    %v404 = vpack.c.b16 %v396, %v395
    %413 = vmatprep.subr.bf16.mxu0 0
    %414 = vmatpush1.bf16.msra.mxu0 %v397
    %415 = vmatprep.subr.bf16.mxu0 0
    %416 = vmatpush1.bf16.msra.mxu0 %v398
    %417 = vmatprep.subr.bf16.mxu0 0
    %418 = vmatpush1.bf16.msra.mxu0 %v399
    %419 = vmatprep.subr.bf16.mxu0 0
    %420 = vmatpush1.bf16.msra.mxu0 %v400
    %421 = vmatprep.subr.bf16.mxu0 0
    %422 = vmatpush1.bf16.msra.mxu0 %v401
    %423 = vmatprep.subr.bf16.mxu0 0
    %424 = vmatpush1.bf16.msra.mxu0 %v402
    %425 = vmatprep.subr.bf16.mxu0 0
    %426 = vmatpush1.bf16.msra.mxu0 %v403
    %427 = vmatprep.subr.bf16.mxu0 0
    %428 = vmatpush1.bf16.msra.mxu0 %v404
    %429 = vmatprep.subr.bf16.mxu0 0
    %430 = vmatpush1.bf16.msra.mxu0 0
    %431 = vmatprep.subr.bf16.mxu0 0
    %432 = vmatpush1.bf16.msra.mxu0 0
    %433 = vmatprep.subr.bf16.mxu0 0
    %434 = vmatpush1.bf16.msra.mxu0 0
    %435 = vmatprep.subr.bf16.mxu0 0
    %436 = vmatpush1.bf16.msra.mxu0 0
    %437 = vmatprep.subr.bf16.mxu0 0
    %438 = vmatpush1.bf16.msra.mxu0 0
    %439 = vmatprep.subr.bf16.mxu0 0
    %440 = vmatpush1.bf16.msra.mxu0 0
    %441 = vmatprep.subr.bf16.mxu0 0
    %442 = vmatpush1.bf16.msra.mxu0 0
    %443 = vmatprep.subr.bf16.mxu0 0
    %444 = vmatpush1.bf16.msra.mxu0 0
    %445 = vmatprep.mubr.bf16.mxu0 0
    %446 = vmatmul.mubr.bf16.gmra.mrb[0].mxu0 %v341
    %v447 = vpop.f32.mrb[0].mxu0
    %v448 = vadd.f32 %v363, %v447
    %v449 = vpop.f32.mrb[0].mxu0
    %v450 = vpop.f32.mrb[0].mxu0
    %v451 = vpop.f32.mrb[0].mxu0
    %452 = vdwg.mxu0
    %v453 = vmax.f32 %v448, 0.0
    %s454 = sld [smem:[#allocation3 + $0x2]]
    %v455 = vstv %s454
    %v456 = vxor.u32 %v197, %v455
    %v457 = vshrl.u32 %v456, 16
    %v458 = vxor.u32 %v456, %v457
    %v459 = vmul.u32 %v458, 2146121005
    %v460 = vshrl.u32 %v459, 15
    %v461 = vxor.u32 %v459, %v460
    %v462 = vmul.u32 %v461, 2221713035
    %v463 = vshrl.u32 %v462, 16
    %v464 = vxor.u32 %v462, %v463
    %v465 = vand.u32 %v464, 2147483647
    %vm466 = vcmp.ge.s32.totalorder %v465, 536870912
    %v467 = vmul.f32 %v453, 1.3333334
    %v468 = vsel %vm466, %v467, 0.0
    %vm469 = vcmp.lt.s32.totalorder %v195, 16
    %v470 = vsel %vm469, %v468, -inf
    %471 = vmax.xlane.f32.xlu0 %v470
    %v472 = vpop.xlane.xlu0 %471
    %v473 = vsub.f32 %v470, %v472
    %v474 = vmul.f32 %v473, 1.442695
    %v475 = vpow.pop %v474
    %476 = vadd.xlane.f32.xlu0 %v475
    %v477 = vpop.xlane.xlu0 %476
    %v478 = vlog2.pop %v477
    %v479 = vmul.f32 %v478, 0.6931472
    %v480 = vsub.f32 %v473, %v479
    %481 = vst [vmem:[#allocation10] sm:$0xff] %v480
    // Predicated region
    $region42: #{mlp_forward.1} parent=1 // pred_check
      _
    $region43: #{mlp_forward.1} parent=1 // pred_check_branch
      %483 = sbr.rel (0) target = $region45
    $region44: #{mlp_forward.1} parent=1 // pred_region
      %s485 = ssub.s32 128, 128
      %486 = vsyncadd [#allocation6], %s485
      %s488 = sshll.u32 [#allocation10], 4
      %s489 = int_to_ptr.vmem [resolvable:$true] %s488
      %491 = dma.vmem_to_hbm [thread:$0]  %s489, 128, %s8, [#allocation6]
    $region45: #{mlp_forward.1} parent=1 // pred_fallthru
      _
    // Predicated region
    $region46: #{mlp_forward.1} parent=1 // pred_check
      _
    $region47: #{mlp_forward.1} parent=1 // pred_check_branch
      %493 = sbr.rel (0) target = $region49
    $region48: #{mlp_forward.1} parent=1 // pred_region
      %494 = dma.done [#allocation6], 128
    $region49: #{mlp_forward.1} parent=1 // pred_fallthru
      _
    %495 = vsyncpa [#allocation5], 1
    %496 = vsyncpa [#allocation8], 1
    %497 = vsyncpa [#allocation6], 1

</llo_original>
